<compile_context>
chip_gen: v7x
topology: tpu7x:2x2x1
jax: 0.10.0
libtpu: 0.0.40
codegen_flags: <defaults>
</compile_context>

<pallas_src>
import jax
import jax.numpy as jnp
from jax.experimental import pallas as pl
from jax.experimental.pallas import tpu as pltpu


def _round_up(v, m):
    return (v + m - 1) // m * m


def _highway_kernel(x_ref, w_ref, b_ref, o_ref):
    x_bf = x_ref[...]                       # (TN, Hp)   bf16 (MXU-native)
    w = w_ref[...]                          # (Hp, 2*Hp) bf16, fused [proj|gate]
    b = b_ref[...]                          # (1, 2*Hp)  f32

    hp = x_bf.shape[-1]

    # Single fused MXU matmul: bf16 inputs, f32 accumulation.
    acc = jnp.dot(x_bf, w, preferred_element_type=jnp.float32) + b

    # proj branch: relu (VPU)
    x_proj = jnp.maximum(acc[:, :hp], 0.0)

    # gate branch: sigmoid via EUP exp + EUP approx reciprocal
    x_gate = pl.reciprocal(1.0 + jnp.exp(-acc[:, hp:]), approx=True)

    # highway combine in f32, rewritten: g*p + (1-g)*x == x + g*(p - x)
    x_f32 = x_bf.astype(jnp.float32)
    o_ref[...] = (x_f32 + x_gate * (x_proj - x_f32)).astype(o_ref.dtype)


def prepare_highway_params(w_proj, b_proj, w_gate, b_gate):
    """One-time parameter prep: transpose to (in,out), pad H to 128-multiple,
    fuse [proj | gate] along the output axis, cast weights to bf16."""
    H = w_proj.shape[0]
    Hp = max(128, _round_up(H, 128))

    def pad_wt(w):  # PyTorch (out,in) -> (in,out), zero-pad to (Hp, Hp)
        wt = jnp.asarray(w, jnp.float32).T
        return jnp.pad(wt, ((0, Hp - H), (0, Hp - H)))

    def pad_b(b):
        return jnp.pad(jnp.asarray(b, jnp.float32), (0, Hp - H))

    w_cat = jnp.concatenate([pad_wt(w_proj), pad_wt(w_gate)],
                            axis=1).astype(jnp.bfloat16)          # (Hp, 2*Hp)
    b_cat = jnp.concatenate([pad_b(b_proj), pad_b(b_gate)]
                            ).reshape(1, 2 * Hp)                  # (1, 2*Hp)
    return w_cat, b_cat


def highway_forward(x, w_cat, b_cat):
    """Highway forward.

    x:      (..., H) activations (any float dtype)
    w_cat:  (Hp, 2*Hp) bf16 fused weight from prepare_highway_params
    b_cat:  (1, 2*Hp)  f32 fused bias   from prepare_highway_params
    """
    orig_shape = x.shape
    H = orig_shape[-1]
    Hp = w_cat.shape[0]

    # Output in the caller's dtype (halves write-back bytes for bf16 models).
    out_dtype = x.dtype
    if out_dtype not in (jnp.dtype(jnp.bfloat16), jnp.dtype(jnp.float16),
                         jnp.dtype(jnp.float32)):
        out_dtype = jnp.dtype(jnp.float32)

    # bf16 activation input stream (kernel upcasts to f32 for the combine).
    x2d = x.reshape(-1, H).astype(jnp.bfloat16)
    N = x2d.shape[0]

    # Only pad columns when H is not already lane-aligned.
    if Hp != H:
        x2d = jnp.pad(x2d, ((0, 0), (0, Hp - H)))

    # Adaptive row tile: ~4 MiB of bf16 activations per tile, multiple of 256
    # (keeps the v5e 4x128 / v6e 2x256 MXU full once H reaches the
    # compute-bound regime); small N collapses to a single block.
    target_bytes = 4 << 20
    tn = _round_up(max(target_bytes // (Hp * 2), 256), 256)
    tn = min(tn, 4096)
    n8 = _round_up(max(N, 1), 8)
    if n8 <= tn:
        tn = n8
    grid = (pl.cdiv(N, tn),)

    # Weight/bias are grid-invariant (constant index_map).  For large slabs,
    # single-buffer them so they don't eat 2x VMEM (critical on v7x's 64 MiB).
    w_bytes = w_cat.size * w_cat.dtype.itemsize
    if w_bytes > (4 << 20):
        w_spec = pl.BlockSpec((Hp, 2 * Hp), lambda i: (0, 0),
                              pipeline_mode=pl.Buffered(1))
        b_spec = pl.BlockSpec((1, 2 * Hp), lambda i: (0, 0),
                              pipeline_mode=pl.Buffered(1))
        w_buf_bytes = w_bytes + b_cat.size * 4
    else:
        w_spec = pl.BlockSpec((Hp, 2 * Hp), lambda i: (0, 0))
        b_spec = pl.BlockSpec((1, 2 * Hp), lambda i: (0, 0))
        w_buf_bytes = 2 * (w_bytes + b_cat.size * 4)

    # VMEM budget derived from the actual footprint (double-buffered x/out
    # streams + resident weights + headroom), capped to fit v7x's 64 MiB.
    x_tile_bytes = tn * Hp * 2
    out_tile_bytes = tn * Hp * jnp.dtype(out_dtype).itemsize
    footprint = 2 * (x_tile_bytes + out_tile_bytes) + w_buf_bytes
    vmem_limit = min(max(int(footprint * 1.5) + (4 << 20), 32 << 20), 56 << 20)

    out = pl.pallas_call(
        _highway_kernel,
        out_shape=jax.ShapeDtypeStruct((N, Hp), out_dtype),
        grid_spec=pltpu.PrefetchScalarGridSpec(
            num_scalar_prefetch=0,
            grid=grid,
            in_specs=[
                pl.BlockSpec((tn, Hp), lambda i: (i, 0)),   # x row tile (bf16)
                w_spec,                                     # fused W (resident)
                b_spec,                                     # fused bias (resident)
            ],
            out_specs=pl.BlockSpec((tn, Hp), lambda i: (i, 0)),
        ),
        compiler_params=pltpu.CompilerParams(
            dimension_semantics=("parallel",),
            vmem_limit_bytes=vmem_limit,
        ),
    )(x2d, w_cat, b_cat)

    # Strip lane padding (rows are exact: no host-side row padding anymore).
    if Hp != H:
        out = out[:, :H]
    return out.reshape(orig_shape)


def _reference(x, w_proj, b_proj, w_gate, b_gate):
    x = x.astype(jnp.float32)
    x_proj = jax.nn.relu(x @ w_proj.T + b_proj)
    x_gate = jax.nn.sigmoid(x @ w_gate.T + b_gate)
    return x_gate * x_proj + (1.0 - x_gate) * x


if __name__ == "__main__":
    key = jax.random.PRNGKey(0)
    batch, seq, hidden = 2, 8, 32
    k_x, k_wp, k_bp, k_wg, k_bg = jax.random.split(key, 5)

    # Deterministic synthetic parameters (PyTorch shapes: weight (out, in)).
    x = jax.random.normal(k_x, (batch, seq, hidden), jnp.float32)
    w_proj = jax.random.normal(k_wp, (hidden, hidden), jnp.float32) * 0.1
    b_proj = jax.random.normal(k_bp, (hidden,), jnp.float32) * 0.1
    w_gate = jax.random.normal(k_wg, (hidden, hidden), jnp.float32) * 0.1
    b_gate = jax.random.normal(k_bg, (hidden,), jnp.float32) * 0.1

    # One-time parameter prep (hoisted out of the per-call path).
    w_cat, b_cat = prepare_highway_params(w_proj, b_proj, w_gate, b_gate)

    out = highway_forward(x, w_cat, b_cat)
    out = jax.block_until_ready(out)

    ref = _reference(x, w_proj, b_proj, w_gate, b_gate)
    assert out.shape == x.shape, (out.shape, x.shape)
    assert out.dtype == x.dtype, (out.dtype, x.dtype)
    max_err = float(jnp.max(jnp.abs(out.astype(jnp.float32) - ref)))
    # bf16 activations/matmul + approx reciprocal: a few e-3 of headroom.
    assert jnp.allclose(out.astype(jnp.float32), ref, atol=3e-2, rtol=3e-2), (
        f"mismatch vs reference, max abs err {max_err}")

    print("KERNEL_OK")
</pallas_src>

<mosaic_0001>
module attributes {stable_mosaic.version = 11 : i64} {
  func.func @_highway_kernel(%arg0: i32, %arg1: memref<16x128xbf16, #tpu.memory_space<vmem>>, %arg2: memref<128x256xbf16, #tpu.memory_space<vmem>>, %arg3: memref<1x256xf32, #tpu.memory_space<vmem>>, %arg4: memref<16x128xf32, #tpu.memory_space<vmem>>) attributes {dimension_semantics = [#tpu.dimension_semantics<parallel>], iteration_bounds = array<i64: 1>, scalar_prefetch = 0 : i64, scratch_operands = 0 : i64, tpu.core_type = #tpu.core_type<tc>, window_params = [{transform_indices = @transform_0, window_bounds = array<i64: 16, 128>}, {pipeline_mode = #tpu.pipeline_mode<synchronous>, transform_indices = @transform_1, window_bounds = array<i64: 128, 256>}, {pipeline_mode = #tpu.pipeline_mode<synchronous>, transform_indices = @transform_2, window_bounds = array<i64: 1, 256>}, {transform_indices = @transform_3, window_bounds = array<i64: 16, 128>}]} {
    %c0 = arith.constant 0 : index
    %c0_0 = arith.constant 0 : index
    %0 = vector.load %arg1[%c0, %c0_0] : memref<16x128xbf16, #tpu.memory_space<vmem>>, vector<16x128xbf16>
    %c0_1 = arith.constant 0 : index
    %c0_2 = arith.constant 0 : index
    %1 = vector.load %arg2[%c0_1, %c0_2] : memref<128x256xbf16, #tpu.memory_space<vmem>>, vector<128x256xbf16>
    %c0_3 = arith.constant 0 : index
    %c0_4 = arith.constant 0 : index
    %2 = vector.load %arg3[%c0_3, %c0_4] : memref<1x256xf32, #tpu.memory_space<vmem>>, vector<1x256xf32>
    %cst = arith.constant dense<0.000000e+00> : vector<16x256xf32>
    %3 = tpu.matmul %0, %1, %cst {dimension_numbers = #tpu.dot_dimension_numbers<[1], [0], [0], [1], [0, 0, 1, 1], [], []>} : vector<16x128xbf16>, vector<128x256xbf16>, vector<16x256xf32> -> vector<16x256xf32>
    %4 = vector.broadcast %2 : vector<1x256xf32> to vector<16x256xf32>
    %5 = arith.addf %3, %4 : vector<16x256xf32>
    %6 = vector.extract_strided_slice %5 {offsets = [0, 0], sizes = [16, 128], strides = [1, 1]} : vector<16x256xf32> to vector<16x128xf32>
    %cst_5 = arith.constant 0.000000e+00 : f32
    %7 = vector.broadcast %cst_5 : f32 to vector<16x128xf32>
    %8 = arith.maximumf %6, %7 : vector<16x128xf32>
    %9 = vector.extract_strided_slice %5 {offsets = [0, 128], sizes = [16, 128], strides = [1, 1]} : vector<16x256xf32> to vector<16x128xf32>
    %cst_6 = arith.constant 0.000000e+00 : f32
    %10 = vector.broadcast %cst_6 : f32 to vector<16x128xf32>
    %11 = arith.subf %10, %9 : vector<16x128xf32>
    %12 = math.exp %11 : vector<16x128xf32>
    %cst_7 = arith.constant 1.000000e+00 : f32
    %13 = vector.broadcast %cst_7 : f32 to vector<16x128xf32>
    %14 = arith.addf %13, %12 : vector<16x128xf32>
    %15 = tpu.reciprocal %14 {approx = true} : vector<16x128xf32> -> vector<16x128xf32>
    %16 = arith.extf %0 : vector<16x128xbf16> to vector<16x128xf32>
    %17 = arith.subf %8, %16 : vector<16x128xf32>
    %18 = arith.mulf %15, %17 : vector<16x128xf32>
    %19 = arith.addf %16, %18 : vector<16x128xf32>
    %c0_8 = arith.constant 0 : index
    %c0_9 = arith.constant 0 : index
    %20 = vector.load %arg4[%c0_8, %c0_9] : memref<16x128xf32, #tpu.memory_space<vmem>>, vector<16x128xf32>
    tpu.vector_store %arg4[%c0_8, %c0_9], %19 {strides = array<i32>} : memref<16x128xf32, #tpu.memory_space<vmem>>, vector<16x128xf32>,
    return
  }
  func.func @transform_0(%arg0: i32) -> (i32, i32) {
    %c0_i32 = arith.constant 0 : i32
    %c0_i32_0 = arith.constant 0 : i32
    return %arg0, %c0_i32 : i32, i32
  }
  func.func @transform_1(%arg0: i32) -> (i32, i32) {
    %c0_i32 = arith.constant 0 : i32
    %c0_i32_0 = arith.constant 0 : i32
    %c0_i32_1 = arith.constant 0 : i32
    return %c0_i32, %c0_i32_0 : i32, i32
  }
  func.func @transform_2(%arg0: i32) -> (i32, i32) {
    %c0_i32 = arith.constant 0 : i32
    %c0_i32_0 = arith.constant 0 : i32
    %c0_i32_1 = arith.constant 0 : i32
    return %c0_i32, %c0_i32_0 : i32, i32
  }
  func.func @transform_3(%arg0: i32) -> (i32, i32) {
    %c0_i32 = arith.constant 0 : i32
    %c0_i32_0 = arith.constant 0 : i32
    return %arg0, %c0_i32 : i32, i32
  }
}

</mosaic_0001>

<llo_original>
// kernel: tpu_custom_call.1
$region0: #{tpu_custom_call.1}
  #allocation0 [shape = 'u32[]', space=smem, size = 0x4, offset = 0x4, fixed_abs, tag = 'smem constant byte address 0x4 - core index']
  #allocation1 [shape = 'u32[144,128]{1,0:T(1,128)}', space=vmem, size = 0x12000, scoped, tag = 'internal scratch']
  %s0 = inlined_call_operand.hbm [shape: bf16[16,128], index: 0, kind: input, shape index: {}]
  %s1 = inlined_call_operand.hbm [shape: bf16[128,256], index: 1, kind: input, shape index: {}]
  %s2 = inlined_call_operand.vmem [shape: f32[1,256], index: 2, kind: input, shape index: {}]
  %s3 = inlined_call_operand.hbm [shape: f32[16,128], index: 3, kind: output, shape index: {}]
  %s4 = sld [smem:[#allocation0]]
  $region30: #{tpu_custom_call.1} parent=0
    _
  %s6 = ssub.s32 1, %s4
  %s7 = scalar_select 0, %s6, %s4
  $region1: #{tpu_custom_call.1} parent=0
    #allocation2 [shape = 'u8[4096]{0}', space=vmem, size = 0x1000, scoped, tag = 'input window, operand 0, single buffered']
    #allocation3 [shape = 's32[1]{0}', space=sflag, size = 0x4, scoped, tag = 'scoped memory for tpu_custom_call.1']
    #allocation4 [shape = 's32[1]{0}', space=sflag, size = 0x4, scoped, tag = 'scoped memory for tpu_custom_call.1']
    #allocation5 [shape = 'u8[65536]{0}', space=vmem, size = 0x10000, scoped, tag = 'input window, operand 1, single buffered']
    #allocation6 [shape = 's32[1]{0}', space=sflag, size = 0x4, scoped, tag = 'scoped memory for tpu_custom_call.1']
    #allocation7 [shape = 'u8[8192]{0}', space=vmem, size = 0x2000, scoped, tag = 'output window, operand 0, single buffered']
    %8 = vsyncpa [#allocation3], 0
    %9 = vsyncpa [#allocation6], 0
    %10 = vsyncpa [#allocation4], 0
    // Predicated region
    $region2: #{tpu_custom_call.1} parent=1 // pred_check
      _
    $region3: #{tpu_custom_call.1} parent=1 // pred_check_branch
      %12 = sbr.rel (0) target = $region5
    $region4: #{tpu_custom_call.1} parent=1 // pred_region
      %s14 = ssub.s32 128, 128
      %15 = vsyncadd [#allocation3], %s14
      %s16 = sshll.u32 [#allocation2], 4
      %s17 = int_to_ptr.vmem [resolvable:$true] %s16
      %22 = dma.hbm_to_vmem [thread:$0]  %s0, 128, %s17, [#allocation3], 64, 64, 4
    $region5: #{tpu_custom_call.1} parent=1 // pred_fallthru
      _
    // Predicated region
    $region6: #{tpu_custom_call.1} parent=1 // pred_check
      _
    $region7: #{tpu_custom_call.1} parent=1 // pred_check_branch
      %24 = sbr.rel (0) target = $region9
    $region8: #{tpu_custom_call.1} parent=1 // pred_region
      %s26 = ssub.s32 2048, 2048
      %27 = vsyncadd [#allocation6], %s26
      %s28 = sshll.u32 [#allocation5], 4
      %s29 = int_to_ptr.vmem [resolvable:$true] %s28
      %34 = dma.hbm_to_vmem [thread:$0]  %s1, 2048, %s29, [#allocation6], 128, 128, 8
    $region9: #{tpu_custom_call.1} parent=1 // pred_fallthru
      _
    // Predicated region
    $region10: #{tpu_custom_call.1} parent=1 // pred_check
      _
    $region11: #{tpu_custom_call.1} parent=1 // pred_check_branch
      %36 = sbr.rel (0) target = $region13
    $region12: #{tpu_custom_call.1} parent=1 // pred_region
      _
    $region13: #{tpu_custom_call.1} parent=1 // pred_fallthru
      _
    // Predicated region
    $region14: #{tpu_custom_call.1} parent=1 // pred_check
      _
    $region15: #{tpu_custom_call.1} parent=1 // pred_check_branch
      %38 = sbr.rel (0) target = $region17
    $region16: #{tpu_custom_call.1} parent=1 // pred_region
      %39 = dma.done [#allocation3], 128
    $region17: #{tpu_custom_call.1} parent=1 // pred_fallthru
      _
    // Predicated region
    $region18: #{tpu_custom_call.1} parent=1 // pred_check
      _
    $region19: #{tpu_custom_call.1} parent=1 // pred_check_branch
      %41 = sbr.rel (0) target = $region21
    $region20: #{tpu_custom_call.1} parent=1 // pred_region
      %42 = dma.done [#allocation6], 2048
    $region21: #{tpu_custom_call.1} parent=1 // pred_fallthru
      _
    %v44 = vld [vmem:[#allocation2] sm:$0xf]
    %v45 = vld [vmem:[#allocation2 + $0x4] sm:$0xf]
    %v46 = vld [vmem:[#allocation5] sm:$0xff]
    %v47 = vld [vmem:[#allocation5 + $0x8] sm:$0xff]
    %v48 = vld [vmem:[#allocation5 + $0x10] sm:$0xff]
    %v49 = vld [vmem:[#allocation5 + $0x18] sm:$0xff]
    %v50 = vld [vmem:[#allocation5 + $0x20] sm:$0xff]
    %v51 = vld [vmem:[#allocation5 + $0x28] sm:$0xff]
    %v52 = vld [vmem:[#allocation5 + $0x30] sm:$0xff]
    %v53 = vld [vmem:[#allocation5 + $0x38] sm:$0xff]
    %v54 = vld [vmem:[#allocation5 + $0x40] sm:$0xff]
    %v55 = vld [vmem:[#allocation5 + $0x48] sm:$0xff]
    %v56 = vld [vmem:[#allocation5 + $0x50] sm:$0xff]
    %v57 = vld [vmem:[#allocation5 + $0x58] sm:$0xff]
    %v58 = vld [vmem:[#allocation5 + $0x60] sm:$0xff]
    %v59 = vld [vmem:[#allocation5 + $0x68] sm:$0xff]
    %v60 = vld [vmem:[#allocation5 + $0x70] sm:$0xff]
    %v61 = vld [vmem:[#allocation5 + $0x78] sm:$0xff]
    %v62 = vld [vmem:[%s2] sm:$0x3]
    %v64 = vlaneseq
    %v65 = vshrl.u32 %v64, 7
    %v66 = vsub.s32 0, %v65
    %v67 = vrot.slane %v62, %v66
    %v68 = vlaneseq
    %v69 = vshrl.u32 %v68, 7
    %v70 = vsub.s32 1, %v69
    %v71 = vrot.slane %v62, %v70
    %v76 = vunpack.c.l.b16 %v44
    %v77 = vunpack.c.l.b16 %v45
    %v78 = vpack.c.b16 %v77, %v76
    %v96 = vunpack.c.l.b16 %v46
    %v97 = vunpack.c.h.b16 %v46
    %v98 = vunpack.c.l.b16 %v47
    %v99 = vunpack.c.h.b16 %v47
    %v100 = vunpack.c.l.b16 %v48
    %v101 = vunpack.c.h.b16 %v48
    %v102 = vunpack.c.l.b16 %v49
    %v103 = vunpack.c.h.b16 %v49
    %v104 = vunpack.c.l.b16 %v50
    %v105 = vunpack.c.h.b16 %v50
    %v106 = vunpack.c.l.b16 %v51
    %v107 = vunpack.c.h.b16 %v51
    %v108 = vunpack.c.l.b16 %v52
    %v109 = vunpack.c.h.b16 %v52
    %v110 = vunpack.c.l.b16 %v53
    %v111 = vunpack.c.h.b16 %v53
    %v112 = vunpack.c.l.b16 %v54
    %v113 = vunpack.c.h.b16 %v54
    %v114 = vunpack.c.l.b16 %v55
    %v115 = vunpack.c.h.b16 %v55
    %v116 = vunpack.c.l.b16 %v56
    %v117 = vunpack.c.h.b16 %v56
    %v118 = vunpack.c.l.b16 %v57
    %v119 = vunpack.c.h.b16 %v57
    %v120 = vunpack.c.l.b16 %v58
    %v121 = vunpack.c.h.b16 %v58
    %v122 = vunpack.c.l.b16 %v59
    %v123 = vunpack.c.h.b16 %v59
    %v124 = vunpack.c.l.b16 %v60
    %v125 = vunpack.c.h.b16 %v60
    %v126 = vunpack.c.l.b16 %v61
    %v127 = vunpack.c.h.b16 %v61
    %v128 = vpack.c.b16 %v98, %v96
    %v129 = vpack.c.b16 %v99, %v97
    %v130 = vpack.c.b16 %v102, %v100
    %v131 = vpack.c.b16 %v103, %v101
    %v132 = vpack.c.b16 %v106, %v104
    %v133 = vpack.c.b16 %v107, %v105
    %v134 = vpack.c.b16 %v110, %v108
    %v135 = vpack.c.b16 %v111, %v109
    %v136 = vpack.c.b16 %v114, %v112
    %v137 = vpack.c.b16 %v115, %v113
    %v138 = vpack.c.b16 %v118, %v116
    %v139 = vpack.c.b16 %v119, %v117
    %v140 = vpack.c.b16 %v122, %v120
    %v141 = vpack.c.b16 %v123, %v121
    %v142 = vpack.c.b16 %v126, %v124
    %v143 = vpack.c.b16 %v127, %v125
    %160 = vmatprep.subr.bf16.mxu0 %v129
    %161 = vmatpush1.bf16.msra.mxu0 %v128
    %162 = vmatprep.subr.bf16.mxu0 %v131
    %163 = vmatpush1.bf16.msra.mxu0 %v130
    %164 = vmatprep.subr.bf16.mxu0 %v133
    %165 = vmatpush1.bf16.msra.mxu0 %v132
    %166 = vmatprep.subr.bf16.mxu0 %v135
    %167 = vmatpush1.bf16.msra.mxu0 %v134
    %168 = vmatprep.subr.bf16.mxu0 %v137
    %169 = vmatpush1.bf16.msra.mxu0 %v136
    %170 = vmatprep.subr.bf16.mxu0 %v139
    %171 = vmatpush1.bf16.msra.mxu0 %v138
    %172 = vmatprep.subr.bf16.mxu0 %v141
    %173 = vmatpush1.bf16.msra.mxu0 %v140
    %174 = vmatprep.subr.bf16.mxu0 %v143
    %175 = vmatpush1.bf16.msra.mxu0 %v142
    %176 = vmatprep.subr.bf16.mxu0 0
    %177 = vmatpush1.bf16.msra.mxu0 0
    %178 = vmatprep.subr.bf16.mxu0 0
    %179 = vmatpush1.bf16.msra.mxu0 0
    %180 = vmatprep.subr.bf16.mxu0 0
    %181 = vmatpush1.bf16.msra.mxu0 0
    %182 = vmatprep.subr.bf16.mxu0 0
    %183 = vmatpush1.bf16.msra.mxu0 0
    %184 = vmatprep.subr.bf16.mxu0 0
    %185 = vmatpush1.bf16.msra.mxu0 0
    %186 = vmatprep.subr.bf16.mxu0 0
    %187 = vmatpush1.bf16.msra.mxu0 0
    %188 = vmatprep.subr.bf16.mxu0 0
    %189 = vmatpush1.bf16.msra.mxu0 0
    %190 = vmatprep.subr.bf16.mxu0 0
    %191 = vmatpush1.bf16.msra.mxu0 0
    %192 = vmatprep.mubr.bf16.mxu0 0
    %193 = vmatmul.mubr.bf16.gmra.mrb[0].mxu0 %v78
    %v194 = vpop.f32.mrb[0].mxu0
    %v195 = vadd.f32 %v67, %v194
    %v196 = vpop.f32.mrb[0].mxu0
    %v197 = vadd.f32 %v71, %v196
    %v198 = vpop.f32.mrb[0].mxu0
    %v199 = vadd.f32 %v67, %v198
    %v200 = vpop.f32.mrb[0].mxu0
    %v201 = vadd.f32 %v71, %v200
    %202 = vdwg.mxu0
    %v203 = vmax.f32 %v195, 0.0
    %v204 = vmax.f32 %v199, 0.0
    %v205 = vsub.f32 0.0, %v197
    %v206 = vsub.f32 0.0, %v201
    %v207 = vmul.f32 %v205, 1.442695
    %v208 = vpow.pop %v207
    %v209 = vmul.f32 %v206, 1.442695
    %v210 = vpow.pop %v209
    %v211 = vadd.f32 %v208, 1.0
    %v212 = vadd.f32 %v210, 1.0
    %v213 = vrcp.pop %v211
    %v214 = vrcp.pop %v212
    %v215 = vunpack.c.l.bf16 %v44
    %v216 = vunpack.c.l.bf16 %v45
    %v217 = vsub.f32 %v203, %v215
    %v218 = vsub.f32 %v204, %v216
    %v219 = vmul.f32 %v213, %v217
    %v220 = vmul.f32 %v214, %v218
    %v221 = vadd.f32 %v215, %v219
    %v222 = vadd.f32 %v216, %v220
    %223 = vst [vmem:[#allocation7] sm:$0xff] %v221
    %224 = vst [vmem:[#allocation7 + $0x8] sm:$0xff] %v222
    // Predicated region
    $region22: #{tpu_custom_call.1} parent=1 // pred_check
      _
    $region23: #{tpu_custom_call.1} parent=1 // pred_check_branch
      %226 = sbr.rel (0) target = $region25
    $region24: #{tpu_custom_call.1} parent=1 // pred_region
      %s228 = ssub.s32 256, 256
      %229 = vsyncadd [#allocation4], %s228
      %s230 = sshll.u32 [#allocation7], 4
      %s231 = int_to_ptr.vmem [resolvable:$true] %s230
      %236 = dma.vmem_to_hbm [thread:$0]  %s231, 256, %s3, [#allocation4], 128, 128, 8
    $region25: #{tpu_custom_call.1} parent=1 // pred_fallthru
      _
    // Predicated region
    $region26: #{tpu_custom_call.1} parent=1 // pred_check
      _
    $region27: #{tpu_custom_call.1} parent=1 // pred_check_branch
      %238 = sbr.rel (0) target = $region29
    $region28: #{tpu_custom_call.1} parent=1 // pred_region
      %239 = dma.done [#allocation4], 256
    $region29: #{tpu_custom_call.1} parent=1 // pred_fallthru
      _
    %240 = vsyncpa [#allocation3], 1
    %241 = vsyncpa [#allocation6], 1
    %242 = vsyncpa [#allocation4], 1

</llo_original>
